<compile_context>
chip_gen: v7x
topology: tpu7x:2x2x1
jax: 0.10.0
libtpu: 0.0.40
codegen_flags: <defaults>
</compile_context>

<pallas_src>
import jax
import jax.numpy as jnp
from jax.experimental import pallas as pl
from jax.experimental.pallas import tpu as pltpu


def _relu_kernel(x_ref, o_ref):
    # Elementwise ReLU on the whole VMEM-resident slab (VPU). `0` is weakly typed,
    # so there is no promotion / cast for f32 or bf16 inputs.
    o_ref[...] = jnp.maximum(x_ref[...], 0)


def _lane_dense_2d(total: int):
    """Pick a (rows, lanes) factorization with lanes a large multiple of 128."""
    for lanes in (1024, 512, 256, 128):
        if total % lanes == 0:
            return total // lanes, lanes
    return None


def relu_pallas(x: jax.Array) -> jax.Array:
    """ReLU(x) for an NCHW (or any-shape) input, computed in a Pallas TPU kernel."""
    orig_shape = x.shape
    total = x.size

    shape2d = _lane_dense_2d(total)
    if shape2d is None:
        # Fallback for sizes not divisible by 128: keep trailing dim on lanes.
        shape2d = (total // orig_shape[-1], orig_shape[-1])
    x2d = x.reshape(shape2d)  # [1,384,14,14] -> (147, 512): lane dim = 512

    out2d = pl.pallas_call(
        _relu_kernel,
        out_shape=jax.ShapeDtypeStruct(x2d.shape, x2d.dtype),
        in_specs=[pl.BlockSpec(memory_space=pltpu.MemorySpace.VMEM)],
        out_specs=pl.BlockSpec(memory_space=pltpu.MemorySpace.VMEM),
        input_output_aliases={0: 0},  # ReLU(inplace=True): reuse the input buffer
    )(x2d)

    return out2d.reshape(orig_shape)


if __name__ == "__main__":
    key = jax.random.PRNGKey(0)
    # Same shape as the reference module's input: [1, 384, 14, 14] (~294 KiB, small).
    x = jax.random.normal(key, (1, 384, 14, 14), dtype=jnp.float32)

    y = relu_pallas(x)
    jax.block_until_ready(y)

    # Correctness check against plain JAX ReLU.
    y_ref = jnp.maximum(x, 0.0)
    assert y.shape == x.shape and y.dtype == x.dtype
    assert jnp.allclose(y, y_ref)

    print("KERNEL_OK")
</pallas_src>

<mosaic_0001>
module attributes {stable_mosaic.version = 11 : i64} {
  func.func @_relu_kernel(%arg0: memref<147x512xf32, #tpu.memory_space<vmem>>, %arg1: memref<147x512xf32, #tpu.memory_space<vmem>>) attributes {dimension_semantics = [], scalar_prefetch = 0 : i64, scratch_operands = 0 : i64, tpu.core_type = #tpu.core_type<tc>} {
    %c0 = arith.constant 0 : index
    %c0_0 = arith.constant 0 : index
    %0 = vector.load %arg0[%c0, %c0_0] : memref<147x512xf32, #tpu.memory_space<vmem>>, vector<147x512xf32>
    %cst = arith.constant 0.000000e+00 : f32
    %1 = vector.broadcast %cst : f32 to vector<147x512xf32>
    %2 = arith.maximumf %0, %1 : vector<147x512xf32>
    %c0_1 = arith.constant 0 : index
    %c0_2 = arith.constant 0 : index
    %3 = vector.load %arg1[%c0_1, %c0_2] : memref<147x512xf32, #tpu.memory_space<vmem>>, vector<147x512xf32>
    tpu.vector_store %arg1[%c0_1, %c0_2], %2 {strides = array<i32>} : memref<147x512xf32, #tpu.memory_space<vmem>>, vector<147x512xf32>,
    return
  }
}

</mosaic_0001>

<llo_original>
// kernel: tpu_custom_call.1
$region0: #{tpu_custom_call.1}
  #allocation0 [shape = 'u32[]', space=smem, size = 0x4, offset = 0x4, fixed_abs, tag = 'smem constant byte address 0x4 - core index']
  #allocation1 [shape = 'u32[144,128]{1,0:T(1,128)}', space=vmem, size = 0x12000, scoped, tag = 'internal scratch']
  %s0 = inlined_call_operand.hbm [shape: f32[147,512], index: 0, kind: input, shape index: {}, may-alias: {0,1}]
  %s1 = inlined_call_operand.hbm [shape: f32[147,512], index: 1, kind: output, shape index: {}, may-alias: {0,1}]
  %s2 = sld [smem:[#allocation0]]
  $region18: #{tpu_custom_call.1} parent=0
    _
  %s4 = ssub.s32 1, %s2
  %s5 = scalar_select 0, %s4, %s2
  $region1: #{tpu_custom_call.1} parent=0
    #allocation2 [shape = 'u8[311296]{0}', space=vmem, size = 0x4c000, scoped, tag = 'input window, operand 0, single buffered']
    #allocation3 [shape = 's32[1]{0}', space=sflag, size = 0x4, scoped, tag = 'scoped memory for tpu_custom_call.1']
    #allocation4 [shape = 's32[1]{0}', space=sflag, size = 0x4, scoped, tag = 'scoped memory for tpu_custom_call.1']
    #allocation5 [shape = 'u8[311296]{0}', space=vmem, size = 0x4c000, scoped, tag = 'output window, operand 0, single buffered']
    %6 = vsyncpa [#allocation3], 0
    %7 = vsyncpa [#allocation4], 0
    // Predicated region
    $region2: #{tpu_custom_call.1} parent=1 // pred_check
      _
    $region3: #{tpu_custom_call.1} parent=1 // pred_check_branch
      %9 = sbr.rel (0) target = $region5
    $region4: #{tpu_custom_call.1} parent=1 // pred_region
      %s11 = ssub.s32 9728, 9728
      %12 = vsyncadd [#allocation3], %s11
      %s13 = sshll.u32 [#allocation2], 4
      %s14 = int_to_ptr.vmem [resolvable:$true] %s13
      %19 = dma.hbm_to_vmem [thread:$0]  %s0, 9728, %s14, [#allocation3], 512, 512, 32
    $region5: #{tpu_custom_call.1} parent=1 // pred_fallthru
      _
    // Predicated region
    $region6: #{tpu_custom_call.1} parent=1 // pred_check
      _
    $region7: #{tpu_custom_call.1} parent=1 // pred_check_branch
      %21 = sbr.rel (0) target = $region9
    $region8: #{tpu_custom_call.1} parent=1 // pred_region
      %22 = dma.done [#allocation3], 9728
    $region9: #{tpu_custom_call.1} parent=1 // pred_fallthru
      _
    %v23 = vld [vmem:[#allocation2] sm:$0xff]
    %v24 = vld [vmem:[#allocation2 + $0x8] sm:$0xff]
    %v25 = vld [vmem:[#allocation2 + $0x10] sm:$0xff]
    %v26 = vld [vmem:[#allocation2 + $0x18] sm:$0xff]
    %v27 = vld [vmem:[#allocation2 + $0x20] sm:$0xff]
    %v28 = vld [vmem:[#allocation2 + $0x28] sm:$0xff]
    %v29 = vld [vmem:[#allocation2 + $0x30] sm:$0xff]
    %v30 = vld [vmem:[#allocation2 + $0x38] sm:$0xff]
    %v31 = vld [vmem:[#allocation2 + $0x40] sm:$0xff]
    %v32 = vld [vmem:[#allocation2 + $0x48] sm:$0xff]
    %v33 = vld [vmem:[#allocation2 + $0x50] sm:$0xff]
    %v34 = vld [vmem:[#allocation2 + $0x58] sm:$0xff]
    %v35 = vld [vmem:[#allocation2 + $0x60] sm:$0xff]
    %v36 = vld [vmem:[#allocation2 + $0x68] sm:$0xff]
    %v37 = vld [vmem:[#allocation2 + $0x70] sm:$0xff]
    %v38 = vld [vmem:[#allocation2 + $0x78] sm:$0xff]
    %v39 = vld [vmem:[#allocation2 + $0x80] sm:$0xff]
    %v40 = vld [vmem:[#allocation2 + $0x88] sm:$0xff]
    %v41 = vld [vmem:[#allocation2 + $0x90] sm:$0xff]
    %v42 = vld [vmem:[#allocation2 + $0x98] sm:$0xff]
    %v43 = vld [vmem:[#allocation2 + $0xa0] sm:$0xff]
    %v44 = vld [vmem:[#allocation2 + $0xa8] sm:$0xff]
    %v45 = vld [vmem:[#allocation2 + $0xb0] sm:$0xff]
    %v46 = vld [vmem:[#allocation2 + $0xb8] sm:$0xff]
    %v47 = vld [vmem:[#allocation2 + $0xc0] sm:$0xff]
    %v48 = vld [vmem:[#allocation2 + $0xc8] sm:$0xff]
    %v49 = vld [vmem:[#allocation2 + $0xd0] sm:$0xff]
    %v50 = vld [vmem:[#allocation2 + $0xd8] sm:$0xff]
    %v51 = vld [vmem:[#allocation2 + $0xe0] sm:$0xff]
    %v52 = vld [vmem:[#allocation2 + $0xe8] sm:$0xff]
    %v53 = vld [vmem:[#allocation2 + $0xf0] sm:$0xff]
    %v54 = vld [vmem:[#allocation2 + $0xf8] sm:$0xff]
    %v55 = vld [vmem:[#allocation2 + $0x100] sm:$0xff]
    %v56 = vld [vmem:[#allocation2 + $0x108] sm:$0xff]
    %v57 = vld [vmem:[#allocation2 + $0x110] sm:$0xff]
    %v58 = vld [vmem:[#allocation2 + $0x118] sm:$0xff]
    %v59 = vld [vmem:[#allocation2 + $0x120] sm:$0xff]
    %v60 = vld [vmem:[#allocation2 + $0x128] sm:$0xff]
    %v61 = vld [vmem:[#allocation2 + $0x130] sm:$0xff]
    %v62 = vld [vmem:[#allocation2 + $0x138] sm:$0xff]
    %v63 = vld [vmem:[#allocation2 + $0x140] sm:$0xff]
    %v64 = vld [vmem:[#allocation2 + $0x148] sm:$0xff]
    %v65 = vld [vmem:[#allocation2 + $0x150] sm:$0xff]
    %v66 = vld [vmem:[#allocation2 + $0x158] sm:$0xff]
    %v67 = vld [vmem:[#allocation2 + $0x160] sm:$0xff]
    %v68 = vld [vmem:[#allocation2 + $0x168] sm:$0xff]
    %v69 = vld [vmem:[#allocation2 + $0x170] sm:$0xff]
    %v70 = vld [vmem:[#allocation2 + $0x178] sm:$0xff]
    %v71 = vld [vmem:[#allocation2 + $0x180] sm:$0xff]
    %v72 = vld [vmem:[#allocation2 + $0x188] sm:$0xff]
    %v73 = vld [vmem:[#allocation2 + $0x190] sm:$0xff]
    %v74 = vld [vmem:[#allocation2 + $0x198] sm:$0xff]
    %v75 = vld [vmem:[#allocation2 + $0x1a0] sm:$0xff]
    %v76 = vld [vmem:[#allocation2 + $0x1a8] sm:$0xff]
    %v77 = vld [vmem:[#allocation2 + $0x1b0] sm:$0xff]
    %v78 = vld [vmem:[#allocation2 + $0x1b8] sm:$0xff]
    %v79 = vld [vmem:[#allocation2 + $0x1c0] sm:$0xff]
    %v80 = vld [vmem:[#allocation2 + $0x1c8] sm:$0xff]
    %v81 = vld [vmem:[#allocation2 + $0x1d0] sm:$0xff]
    %v82 = vld [vmem:[#allocation2 + $0x1d8] sm:$0xff]
    %v83 = vld [vmem:[#allocation2 + $0x1e0] sm:$0xff]
    %v84 = vld [vmem:[#allocation2 + $0x1e8] sm:$0xff]
    %v85 = vld [vmem:[#allocation2 + $0x1f0] sm:$0xff]
    %v86 = vld [vmem:[#allocation2 + $0x1f8] sm:$0xff]
    %v87 = vld [vmem:[#allocation2 + $0x200] sm:$0xff]
    %v88 = vld [vmem:[#allocation2 + $0x208] sm:$0xff]
    %v89 = vld [vmem:[#allocation2 + $0x210] sm:$0xff]
    %v90 = vld [vmem:[#allocation2 + $0x218] sm:$0xff]
    %v91 = vld [vmem:[#allocation2 + $0x220] sm:$0xff]
    %v92 = vld [vmem:[#allocation2 + $0x228] sm:$0xff]
    %v93 = vld [vmem:[#allocation2 + $0x230] sm:$0xff]
    %v94 = vld [vmem:[#allocation2 + $0x238] sm:$0xff]
    %v95 = vld [vmem:[#allocation2 + $0x240] sm:$0x7]
    %v96 = vld [vmem:[#allocation2 + $0x248] sm:$0x7]
    %v97 = vld [vmem:[#allocation2 + $0x250] sm:$0x7]
    %v98 = vld [vmem:[#allocation2 + $0x258] sm:$0x7]
    %v99 = vmax.f32 %v23, 0.0
    %v100 = vmax.f32 %v24, 0.0
    %v101 = vmax.f32 %v25, 0.0
    %v102 = vmax.f32 %v26, 0.0
    %v103 = vmax.f32 %v27, 0.0
    %v104 = vmax.f32 %v28, 0.0
    %v105 = vmax.f32 %v29, 0.0
    %v106 = vmax.f32 %v30, 0.0
    %v107 = vmax.f32 %v31, 0.0
    %v108 = vmax.f32 %v32, 0.0
    %v109 = vmax.f32 %v33, 0.0
    %v110 = vmax.f32 %v34, 0.0
    %v111 = vmax.f32 %v35, 0.0
    %v112 = vmax.f32 %v36, 0.0
    %v113 = vmax.f32 %v37, 0.0
    %v114 = vmax.f32 %v38, 0.0
    %v115 = vmax.f32 %v39, 0.0
    %v116 = vmax.f32 %v40, 0.0
    %v117 = vmax.f32 %v41, 0.0
    %v118 = vmax.f32 %v42, 0.0
    %v119 = vmax.f32 %v43, 0.0
    %v120 = vmax.f32 %v44, 0.0
    %v121 = vmax.f32 %v45, 0.0
    %v122 = vmax.f32 %v46, 0.0
    %v123 = vmax.f32 %v47, 0.0
    %v124 = vmax.f32 %v48, 0.0
    %v125 = vmax.f32 %v49, 0.0
    %v126 = vmax.f32 %v50, 0.0
    %v127 = vmax.f32 %v51, 0.0
    %v128 = vmax.f32 %v52, 0.0
    %v129 = vmax.f32 %v53, 0.0
    %v130 = vmax.f32 %v54, 0.0
    %v131 = vmax.f32 %v55, 0.0
    %v132 = vmax.f32 %v56, 0.0
    %v133 = vmax.f32 %v57, 0.0
    %v134 = vmax.f32 %v58, 0.0
    %v135 = vmax.f32 %v59, 0.0
    %v136 = vmax.f32 %v60, 0.0
    %v137 = vmax.f32 %v61, 0.0
    %v138 = vmax.f32 %v62, 0.0
    %v139 = vmax.f32 %v63, 0.0
    %v140 = vmax.f32 %v64, 0.0
    %v141 = vmax.f32 %v65, 0.0
    %v142 = vmax.f32 %v66, 0.0
    %v143 = vmax.f32 %v67, 0.0
    %v144 = vmax.f32 %v68, 0.0
    %v145 = vmax.f32 %v69, 0.0
    %v146 = vmax.f32 %v70, 0.0
    %v147 = vmax.f32 %v71, 0.0
    %v148 = vmax.f32 %v72, 0.0
    %v149 = vmax.f32 %v73, 0.0
    %v150 = vmax.f32 %v74, 0.0
    %v151 = vmax.f32 %v75, 0.0
    %v152 = vmax.f32 %v76, 0.0
    %v153 = vmax.f32 %v77, 0.0
    %v154 = vmax.f32 %v78, 0.0
    %v155 = vmax.f32 %v79, 0.0
    %v156 = vmax.f32 %v80, 0.0
    %v157 = vmax.f32 %v81, 0.0
    %v158 = vmax.f32 %v82, 0.0
    %v159 = vmax.f32 %v83, 0.0
    %v160 = vmax.f32 %v84, 0.0
    %v161 = vmax.f32 %v85, 0.0
    %v162 = vmax.f32 %v86, 0.0
    %v163 = vmax.f32 %v87, 0.0
    %v164 = vmax.f32 %v88, 0.0
    %v165 = vmax.f32 %v89, 0.0
    %v166 = vmax.f32 %v90, 0.0
    %v167 = vmax.f32 %v91, 0.0
    %v168 = vmax.f32 %v92, 0.0
    %v169 = vmax.f32 %v93, 0.0
    %v170 = vmax.f32 %v94, 0.0
    %v171 = vmax.f32 %v95, 0.0
    %v172 = vmax.f32 %v96, 0.0
    %v173 = vmax.f32 %v97, 0.0
    %v174 = vmax.f32 %v98, 0.0
    %175 = vst [vmem:[#allocation5] sm:$0xff] %v99
    %176 = vst [vmem:[#allocation5 + $0x8] sm:$0xff] %v100
    %177 = vst [vmem:[#allocation5 + $0x10] sm:$0xff] %v101
    %178 = vst [vmem:[#allocation5 + $0x18] sm:$0xff] %v102
    %179 = vst [vmem:[#allocation5 + $0x20] sm:$0xff] %v103
    %180 = vst [vmem:[#allocation5 + $0x28] sm:$0xff] %v104
    %181 = vst [vmem:[#allocation5 + $0x30] sm:$0xff] %v105
    %182 = vst [vmem:[#allocation5 + $0x38] sm:$0xff] %v106
    %183 = vst [vmem:[#allocation5 + $0x40] sm:$0xff] %v107
    %184 = vst [vmem:[#allocation5 + $0x48] sm:$0xff] %v108
    %185 = vst [vmem:[#allocation5 + $0x50] sm:$0xff] %v109
    %186 = vst [vmem:[#allocation5 + $0x58] sm:$0xff] %v110
    %187 = vst [vmem:[#allocation5 + $0x60] sm:$0xff] %v111
    %188 = vst [vmem:[#allocation5 + $0x68] sm:$0xff] %v112
    %189 = vst [vmem:[#allocation5 + $0x70] sm:$0xff] %v113
    %190 = vst [vmem:[#allocation5 + $0x78] sm:$0xff] %v114
    %191 = vst [vmem:[#allocation5 + $0x80] sm:$0xff] %v115
    %192 = vst [vmem:[#allocation5 + $0x88] sm:$0xff] %v116
    %193 = vst [vmem:[#allocation5 + $0x90] sm:$0xff] %v117
    %194 = vst [vmem:[#allocation5 + $0x98] sm:$0xff] %v118
    %195 = vst [vmem:[#allocation5 + $0xa0] sm:$0xff] %v119
    %196 = vst [vmem:[#allocation5 + $0xa8] sm:$0xff] %v120
    %197 = vst [vmem:[#allocation5 + $0xb0] sm:$0xff] %v121
    %198 = vst [vmem:[#allocation5 + $0xb8] sm:$0xff] %v122
    %199 = vst [vmem:[#allocation5 + $0xc0] sm:$0xff] %v123
    %200 = vst [vmem:[#allocation5 + $0xc8] sm:$0xff] %v124
    %201 = vst [vmem:[#allocation5 + $0xd0] sm:$0xff] %v125
    %202 = vst [vmem:[#allocation5 + $0xd8] sm:$0xff] %v126
    %203 = vst [vmem:[#allocation5 + $0xe0] sm:$0xff] %v127
    %204 = vst [vmem:[#allocation5 + $0xe8] sm:$0xff] %v128
    %205 = vst [vmem:[#allocation5 + $0xf0] sm:$0xff] %v129
    %206 = vst [vmem:[#allocation5 + $0xf8] sm:$0xff] %v130
    %207 = vst [vmem:[#allocation5 + $0x100] sm:$0xff] %v131
    %208 = vst [vmem:[#allocation5 + $0x108] sm:$0xff] %v132
    %209 = vst [vmem:[#allocation5 + $0x110] sm:$0xff] %v133
    %210 = vst [vmem:[#allocation5 + $0x118] sm:$0xff] %v134
    %211 = vst [vmem:[#allocation5 + $0x120] sm:$0xff] %v135
    %212 = vst [vmem:[#allocation5 + $0x128] sm:$0xff] %v136
    %213 = vst [vmem:[#allocation5 + $0x130] sm:$0xff] %v137
    %214 = vst [vmem:[#allocation5 + $0x138] sm:$0xff] %v138
    %215 = vst [vmem:[#allocation5 + $0x140] sm:$0xff] %v139
    %216 = vst [vmem:[#allocation5 + $0x148] sm:$0xff] %v140
    %217 = vst [vmem:[#allocation5 + $0x150] sm:$0xff] %v141
    %218 = vst [vmem:[#allocation5 + $0x158] sm:$0xff] %v142
    %219 = vst [vmem:[#allocation5 + $0x160] sm:$0xff] %v143
    %220 = vst [vmem:[#allocation5 + $0x168] sm:$0xff] %v144
    %221 = vst [vmem:[#allocation5 + $0x170] sm:$0xff] %v145
    %222 = vst [vmem:[#allocation5 + $0x178] sm:$0xff] %v146
    %223 = vst [vmem:[#allocation5 + $0x180] sm:$0xff] %v147
    %224 = vst [vmem:[#allocation5 + $0x188] sm:$0xff] %v148
    %225 = vst [vmem:[#allocation5 + $0x190] sm:$0xff] %v149
    %226 = vst [vmem:[#allocation5 + $0x198] sm:$0xff] %v150
    %227 = vst [vmem:[#allocation5 + $0x1a0] sm:$0xff] %v151
    %228 = vst [vmem:[#allocation5 + $0x1a8] sm:$0xff] %v152
    %229 = vst [vmem:[#allocation5 + $0x1b0] sm:$0xff] %v153
    %230 = vst [vmem:[#allocation5 + $0x1b8] sm:$0xff] %v154
    %231 = vst [vmem:[#allocation5 + $0x1c0] sm:$0xff] %v155
    %232 = vst [vmem:[#allocation5 + $0x1c8] sm:$0xff] %v156
    %233 = vst [vmem:[#allocation5 + $0x1d0] sm:$0xff] %v157
    %234 = vst [vmem:[#allocation5 + $0x1d8] sm:$0xff] %v158
    %235 = vst [vmem:[#allocation5 + $0x1e0] sm:$0xff] %v159
    %236 = vst [vmem:[#allocation5 + $0x1e8] sm:$0xff] %v160
    %237 = vst [vmem:[#allocation5 + $0x1f0] sm:$0xff] %v161
    %238 = vst [vmem:[#allocation5 + $0x1f8] sm:$0xff] %v162
    %239 = vst [vmem:[#allocation5 + $0x200] sm:$0xff] %v163
    %240 = vst [vmem:[#allocation5 + $0x208] sm:$0xff] %v164
    %241 = vst [vmem:[#allocation5 + $0x210] sm:$0xff] %v165
    %242 = vst [vmem:[#allocation5 + $0x218] sm:$0xff] %v166
    %243 = vst [vmem:[#allocation5 + $0x220] sm:$0xff] %v167
    %244 = vst [vmem:[#allocation5 + $0x228] sm:$0xff] %v168
    %245 = vst [vmem:[#allocation5 + $0x230] sm:$0xff] %v169
    %246 = vst [vmem:[#allocation5 + $0x238] sm:$0xff] %v170
    %247 = vst [vmem:[#allocation5 + $0x240] sm:$0x7] %v171
    %248 = vst [vmem:[#allocation5 + $0x248] sm:$0x7] %v172
    %249 = vst [vmem:[#allocation5 + $0x250] sm:$0x7] %v173
    %250 = vst [vmem:[#allocation5 + $0x258] sm:$0x7] %v174
    // Predicated region
    $region10: #{tpu_custom_call.1} parent=1 // pred_check
      _
    $region11: #{tpu_custom_call.1} parent=1 // pred_check_branch
      %252 = sbr.rel (0) target = $region13
    $region12: #{tpu_custom_call.1} parent=1 // pred_region
      %s254 = ssub.s32 9728, 9728
      %255 = vsyncadd [#allocation4], %s254
      %s256 = sshll.u32 [#allocation5], 4
      %s257 = int_to_ptr.vmem [resolvable:$true] %s256
      %262 = dma.vmem_to_hbm [thread:$0]  %s257, 9728, %s1, [#allocation4], 512, 512, 32
    $region13: #{tpu_custom_call.1} parent=1 // pred_fallthru
      _
    // Predicated region
    $region14: #{tpu_custom_call.1} parent=1 // pred_check
      _
    $region15: #{tpu_custom_call.1} parent=1 // pred_check_branch
      %264 = sbr.rel (0) target = $region17
    $region16: #{tpu_custom_call.1} parent=1 // pred_region
      %265 = dma.done [#allocation4], 9728
    $region17: #{tpu_custom_call.1} parent=1 // pred_fallthru
      _
    %266 = vsyncpa [#allocation3], 1
    %267 = vsyncpa [#allocation4], 1

</llo_original>
